<compile_context>
chip_gen: v5e
topology: v5e:2x2
jax: 0.10.0
libtpu: 0.0.40
codegen_flags: <defaults>
</compile_context>

<pallas_src>
import functools

import jax
import jax.numpy as jnp
from jax.experimental import pallas as pl
from jax.experimental.pallas import tpu as pltpu


def _pool_axis(v, k, first_mask, last_mask):
    """Max over {m-k, m, m+k} along the flat minor axis.

    Shifts are circular XLU lane rotations (pltpu.roll); the wrapped lanes are
    exactly the ones flagged by first_mask/last_mask and fall back to the
    centre value, which is equivalent to -inf padding (the centre element is
    always inside the 3-window).
    """
    m = v.shape[-1]
    nxt = pltpu.roll(v, shift=m - k, axis=1)   # v[:, (i + k) % m]
    prv = pltpu.roll(v, shift=k, axis=1)       # v[:, (i - k) % m]
    nxt = jnp.where(last_mask, v, nxt)
    prv = jnp.where(first_mask, v, prv)
    return jnp.maximum(v, jnp.maximum(nxt, prv))


def _branch3_kernel(x_ref, w_ref, shift_ref, o_ref, *, D, H, W):
    # x_ref:     (nb, Cin,  M)  nb batch elements, NCDHW flattened over space
    # w_ref:     (Cout, Cin)    1x1x1 conv weight with BN scale pre-folded
    # shift_ref: (Cout, 1)      folded BN shift (float32)
    # o_ref:     (nb, Cout, M)
    nb, _, M = x_ref.shape

    # Boundary masks along m = (d*H + h)*W + w, built once per grid step on a
    # single (1, M) lane row; jnp.where sublane-broadcasts them over channels.
    lane = jax.lax.broadcasted_iota(jnp.int32, (1, M), 1)
    w_pos = lane % W
    hw_pos = lane % (W * H)
    w_first, w_last = w_pos == 0, w_pos == W - 1
    h_first, h_last = hw_pos < W, hw_pos >= W * (H - 1)
    d_first, d_last = lane < W * H, lane >= M - W * H

    w = w_ref[...]
    shift = shift_ref[...]

    for b in range(nb):                       # nb is small & static (unrolled)
        # Pool in f32: max-pooling only selects existing values, so the cast
        # back to the I/O dtype before the matmul is lossless.
        p = x_ref[b].astype(jnp.float32)
        if W > 1:
            p = _pool_axis(p, 1, w_first, w_last)
        if H > 1:
            p = _pool_axis(p, W, h_first, h_last)
        if D > 1:
            p = _pool_axis(p, W * H, d_first, d_last)

        # 1x1x1 conv == (Cout, Cin) @ (Cin, M) matmul on the MXU (f32 acc).
        y = jnp.dot(w, p.astype(w.dtype), preferred_element_type=jnp.float32)
        y = y + shift                         # folded BN shift, broadcast over M
        y = jnp.maximum(y, 0.0)               # ReLU
        o_ref[b] = y.astype(o_ref.dtype)


def _pick_batch_block(N, Cin, Cout, M, itemsize, budget_bytes=8 << 20):
    """Largest divisor of N whose double-buffered in+out block fits the budget."""
    per_elem = 2 * (Cin + Cout) * M * itemsize
    nb = max(1, min(N, budget_bytes // max(per_elem, 1)))
    while N % nb:
        nb -= 1
    return int(nb)


def inception_branch3(x_ncdhw, conv_w, bn_gamma, bn_beta, bn_mean, bn_var,
                      eps=1e-5):
    """x_ncdhw: (N, Cin, D, H, W) PyTorch layout. conv_w: (Cout, Cin, 1, 1, 1).

    Output dtype follows x_ncdhw.dtype; pass a bf16 input for bf16 HBM I/O.
    """
    N, Cin, D, H, W = x_ncdhw.shape
    Cout = conv_w.shape[0]
    M = D * H * W

    # Free (contiguous) view: keep PyTorch channel-major layout, flatten space.
    x2 = x_ncdhw.reshape(N, Cin, M)

    # Fold eval-mode BatchNorm into the conv weight + a per-channel shift.
    scale = bn_gamma / jnp.sqrt(bn_var + eps)                       # (Cout,)
    w2 = (conv_w.reshape(Cout, Cin).astype(jnp.float32)
          * scale[:, None]).astype(x2.dtype)
    shift = (bn_beta - bn_mean * scale).reshape(Cout, 1).astype(jnp.float32)

    nb = _pick_batch_block(N, Cin, Cout, M, jnp.dtype(x2.dtype).itemsize)
    block_bytes = nb * (Cin + Cout) * M * jnp.dtype(x2.dtype).itemsize
    vmem_limit = int(min(max(4 * block_bytes + (2 << 20), 16 << 20), 48 << 20))

    kernel = functools.partial(_branch3_kernel, D=D, H=H, W=W)
    out = pl.pallas_call(
        kernel,
        out_shape=jax.ShapeDtypeStruct((N, Cout, M), x2.dtype),
        grid_spec=pltpu.PrefetchScalarGridSpec(
            num_scalar_prefetch=0,
            grid=(N // nb,),                       # one step per batch chunk
            in_specs=[
                pl.BlockSpec((nb, Cin, M), lambda n: (n, 0, 0)),
                pl.BlockSpec((Cout, Cin), lambda n: (0, 0)),
                pl.BlockSpec((Cout, 1), lambda n: (0, 0)),
            ],
            out_specs=pl.BlockSpec((nb, Cout, M), lambda n: (n, 0, 0)),
        ),
        compiler_params=pltpu.CompilerParams(
            dimension_semantics=("parallel",),
            vmem_limit_bytes=vmem_limit),
    )(x2, w2, shift)

    return out.reshape(N, Cout, D, H, W)                # free contiguous view


def _reference(x_ncdhw, conv_w, gamma, beta, mean, var, eps=1e-5):
    """Pure-JAX reference mirroring the PyTorch forward (eval-mode BN)."""
    pooled = jax.lax.reduce_window(
        x_ncdhw, -jnp.inf, jax.lax.max,
        window_dimensions=(1, 1, 3, 3, 3),
        window_strides=(1, 1, 1, 1, 1),
        padding=((0, 0), (0, 0), (1, 1), (1, 1), (1, 1)))
    w2 = conv_w.reshape(conv_w.shape[0], conv_w.shape[1])           # (Cout, Cin)
    y = jnp.einsum('ncdhw,oc->nodhw', pooled, w2)
    scale = gamma / jnp.sqrt(var + eps)
    shift = beta - mean * scale
    y = y * scale[None, :, None, None, None] + shift[None, :, None, None, None]
    return jnp.maximum(y, 0.0)


if __name__ == "__main__":
    # Small shapes: name='Mixed_3b' -> out_channels = 32
    N, Cin, D, H, W = 2, 32, 4, 8, 8
    Cout = 32

    key = jax.random.PRNGKey(0)
    kx, kw, kg, kb, km, kv = jax.random.split(key, 6)

    x = jax.random.normal(kx, (N, Cin, D, H, W), dtype=jnp.float32)
    conv_w = jax.random.normal(kw, (Cout, Cin, 1, 1, 1), dtype=jnp.float32) * 0.1
    bn_gamma = 1.0 + 0.1 * jax.random.normal(kg, (Cout,), dtype=jnp.float32)
    bn_beta = 0.1 * jax.random.normal(kb, (Cout,), dtype=jnp.float32)
    bn_mean = 0.05 * jax.random.normal(km, (Cout,), dtype=jnp.float32)
    bn_var = 1.0 + 0.1 * jax.random.uniform(kv, (Cout,), dtype=jnp.float32)

    ref = _reference(x, conv_w, bn_gamma, bn_beta, bn_mean, bn_var)

    # f32 end-to-end: tight check against the pure-JAX reference.
    out = inception_branch3(x, conv_w, bn_gamma, bn_beta, bn_mean, bn_var)
    out = jax.block_until_ready(out)
    assert out.shape == (N, Cout, D, H, W), out.shape
    assert jnp.allclose(out, ref, atol=1e-4, rtol=1e-4), (
        float(jnp.max(jnp.abs(out - ref))))

    # bf16 HBM I/O (the main v6e/v7x lever): pooling stays exact, the conv
    # accumulates in f32, so only x/w/out quantization noise remains.
    out_bf16 = inception_branch3(x.astype(jnp.bfloat16), conv_w, bn_gamma,
                                 bn_beta, bn_mean, bn_var)
    out_bf16 = jax.block_until_ready(out_bf16)
    assert out_bf16.dtype == jnp.bfloat16
    assert jnp.allclose(out_bf16.astype(jnp.float32), ref,
                        atol=1e-1, rtol=1e-1), (
        float(jnp.max(jnp.abs(out_bf16.astype(jnp.float32) - ref))))

    print("KERNEL_OK")
</pallas_src>

<mosaic_0001>
module attributes {stable_mosaic.version = 11 : i64} {
  func.func @_branch3_kernel(%arg0: i32, %arg1: memref<2x32x256xf32, #tpu.memory_space<vmem>>, %arg2: memref<32x32xf32, #tpu.memory_space<vmem>>, %arg3: memref<32x1xf32, #tpu.memory_space<vmem>>, %arg4: memref<2x32x256xf32, #tpu.memory_space<vmem>>) attributes {dimension_semantics = [#tpu.dimension_semantics<parallel>], iteration_bounds = array<i64: 1>, scalar_prefetch = 0 : i64, scratch_operands = 0 : i64, tpu.core_type = #tpu.core_type<tc>, window_params = [{transform_indices = @transform_0, window_bounds = array<i64: 2, 32, 256>}, {pipeline_mode = #tpu.pipeline_mode<synchronous>, transform_indices = @transform_1, window_bounds = array<i64: 32, 32>}, {pipeline_mode = #tpu.pipeline_mode<synchronous>, transform_indices = @transform_2, window_bounds = array<i64: 32, 1>}, {transform_indices = @transform_3, window_bounds = array<i64: 2, 32, 256>}]} {
    %0 = tpu.iota {dimensions = array<i32: 1>} : vector<1x256xi32>
    %c8_i32 = arith.constant 8 : i32
    %c0_i32 = arith.constant 0 : i32
    %1 = arith.cmpi eq, %c8_i32, %c0_i32 : i32
    %c1_i32 = arith.constant 1 : i32
    %2 = arith.select %1, %c1_i32, %c8_i32 : i32
    %3 = vector.broadcast %2 : i32 to vector<1x256xi32>
    %4 = arith.remsi %0, %3 : vector<1x256xi32>
    %c0_i32_0 = arith.constant 0 : i32
    %5 = vector.broadcast %c0_i32_0 : i32 to vector<1x256xi32>
    %6 = arith.cmpi ne, %4, %5 : vector<1x256xi32>
    %c0_i32_1 = arith.constant 0 : i32
    %7 = vector.broadcast %c0_i32_1 : i32 to vector<1x256xi32>
    %8 = arith.cmpi slt, %4, %7 : vector<1x256xi32>
    %c0_i32_2 = arith.constant 0 : i32
    %9 = arith.cmpi slt, %2, %c0_i32_2 : i32
    %10 = vector.broadcast %9 : i1 to vector<1x256xi1>
    %11 = vector.broadcast %10 : vector<1x256xi1> to vector<1x256xi1>
    %12 = arith.xori %8, %11 : vector<1x256xi1>
    %13 = arith.andi %12, %6 : vector<1x256xi1>
    %14 = vector.broadcast %2 : i32 to vector<1x256xi32>
    %15 = arith.addi %4, %14 : vector<1x256xi32>
    %16 = arith.select %13, %15, %4 : vector<1x256xi1>, vector<1x256xi32>
    %c64_i32 = arith.constant 64 : i32
    %c0_i32_3 = arith.constant 0 : i32
    %17 = arith.cmpi eq, %c64_i32, %c0_i32_3 : i32
    %c1_i32_4 = arith.constant 1 : i32
    %18 = arith.select %17, %c1_i32_4, %c64_i32 : i32
    %19 = vector.broadcast %18 : i32 to vector<1x256xi32>
    %20 = arith.remsi %0, %19 : vector<1x256xi32>
    %c0_i32_5 = arith.constant 0 : i32
    %21 = vector.broadcast %c0_i32_5 : i32 to vector<1x256xi32>
    %22 = arith.cmpi ne, %20, %21 : vector<1x256xi32>
    %c0_i32_6 = arith.constant 0 : i32
    %23 = vector.broadcast %c0_i32_6 : i32 to vector<1x256xi32>
    %24 = arith.cmpi slt, %20, %23 : vector<1x256xi32>
    %c0_i32_7 = arith.constant 0 : i32
    %25 = arith.cmpi slt, %18, %c0_i32_7 : i32
    %26 = vector.broadcast %25 : i1 to vector<1x256xi1>
    %27 = vector.broadcast %26 : vector<1x256xi1> to vector<1x256xi1>
    %28 = arith.xori %24, %27 : vector<1x256xi1>
    %29 = arith.andi %28, %22 : vector<1x256xi1>
    %30 = vector.broadcast %18 : i32 to vector<1x256xi32>
    %31 = arith.addi %20, %30 : vector<1x256xi32>
    %32 = arith.select %29, %31, %20 : vector<1x256xi1>, vector<1x256xi32>
    %c0_i32_8 = arith.constant 0 : i32
    %33 = vector.broadcast %c0_i32_8 : i32 to vector<1x256xi32>
    %34 = arith.cmpi eq, %16, %33 : vector<1x256xi32>
    %c7_i32 = arith.constant 7 : i32
    %35 = vector.broadcast %c7_i32 : i32 to vector<1x256xi32>
    %36 = arith.cmpi eq, %16, %35 : vector<1x256xi32>
    %c8_i32_9 = arith.constant 8 : i32
    %37 = vector.broadcast %c8_i32_9 : i32 to vector<1x256xi32>
    %38 = arith.cmpi slt, %32, %37 : vector<1x256xi32>
    %c56_i32 = arith.constant 56 : i32
    %39 = vector.broadcast %c56_i32 : i32 to vector<1x256xi32>
    %40 = arith.cmpi sge, %32, %39 : vector<1x256xi32>
    %c64_i32_10 = arith.constant 64 : i32
    %41 = vector.broadcast %c64_i32_10 : i32 to vector<1x256xi32>
    %42 = arith.cmpi slt, %0, %41 : vector<1x256xi32>
    %c192_i32 = arith.constant 192 : i32
    %43 = vector.broadcast %c192_i32 : i32 to vector<1x256xi32>
    %44 = arith.cmpi sge, %0, %43 : vector<1x256xi32>
    %c0 = arith.constant 0 : index
    %c0_11 = arith.constant 0 : index
    %45 = vector.load %arg2[%c0, %c0_11] : memref<32x32xf32, #tpu.memory_space<vmem>>, vector<32x32xf32>
    %c0_12 = arith.constant 0 : index
    %c0_13 = arith.constant 0 : index
    %46 = vector.load %arg3[%c0_12, %c0_13] : memref<32x1xf32, #tpu.memory_space<vmem>>, vector<32x1xf32>
    %c0_14 = arith.constant 0 : index
    %c0_15 = arith.constant 0 : index
    %c0_16 = arith.constant 0 : index
    %47 = vector.load %arg1[%c0_14, %c0_15, %c0_16] : memref<2x32x256xf32, #tpu.memory_space<vmem>>, vector<1x32x256xf32>
    %48 = vector.shape_cast %47 : vector<1x32x256xf32> to vector<32x256xf32>
    %c255_i32 = arith.constant 255 : i32
    %49 = tpu.dynamic_rotate %48 by %c255_i32 dim 1 : vector<32x256xf32>, i32 -> vector<32x256xf32>
    %c1_i32_17 = arith.constant 1 : i32
    %50 = tpu.dynamic_rotate %48 by %c1_i32_17 dim 1 : vector<32x256xf32>, i32 -> vector<32x256xf32>
    %51 = vector.shape_cast %36 : vector<1x256xi1> to vector<1x256xi1>
    %52 = vector.broadcast %51 : vector<1x256xi1> to vector<32x256xi1>
    %53 = arith.select %52, %48, %49 : vector<32x256xi1>, vector<32x256xf32>
    %54 = vector.shape_cast %34 : vector<1x256xi1> to vector<1x256xi1>
    %55 = vector.broadcast %54 : vector<1x256xi1> to vector<32x256xi1>
    %56 = arith.select %55, %48, %50 : vector<32x256xi1>, vector<32x256xf32>
    %57 = arith.maximumf %53, %56 : vector<32x256xf32>
    %58 = arith.maximumf %48, %57 : vector<32x256xf32>
    %c248_i32 = arith.constant 248 : i32
    %59 = tpu.dynamic_rotate %58 by %c248_i32 dim 1 : vector<32x256xf32>, i32 -> vector<32x256xf32>
    %c8_i32_18 = arith.constant 8 : i32
    %60 = tpu.dynamic_rotate %58 by %c8_i32_18 dim 1 : vector<32x256xf32>, i32 -> vector<32x256xf32>
    %61 = vector.shape_cast %40 : vector<1x256xi1> to vector<1x256xi1>
    %62 = vector.broadcast %61 : vector<1x256xi1> to vector<32x256xi1>
    %63 = arith.select %62, %58, %59 : vector<32x256xi1>, vector<32x256xf32>
    %64 = vector.shape_cast %38 : vector<1x256xi1> to vector<1x256xi1>
    %65 = vector.broadcast %64 : vector<1x256xi1> to vector<32x256xi1>
    %66 = arith.select %65, %58, %60 : vector<32x256xi1>, vector<32x256xf32>
    %67 = arith.maximumf %63, %66 : vector<32x256xf32>
    %68 = arith.maximumf %58, %67 : vector<32x256xf32>
    %c192_i32_19 = arith.constant 192 : i32
    %69 = tpu.dynamic_rotate %68 by %c192_i32_19 dim 1 : vector<32x256xf32>, i32 -> vector<32x256xf32>
    %c64_i32_20 = arith.constant 64 : i32
    %70 = tpu.dynamic_rotate %68 by %c64_i32_20 dim 1 : vector<32x256xf32>, i32 -> vector<32x256xf32>
    %71 = vector.shape_cast %44 : vector<1x256xi1> to vector<1x256xi1>
    %72 = vector.broadcast %71 : vector<1x256xi1> to vector<32x256xi1>
    %73 = arith.select %72, %68, %69 : vector<32x256xi1>, vector<32x256xf32>
    %74 = vector.shape_cast %42 : vector<1x256xi1> to vector<1x256xi1>
    %75 = vector.broadcast %74 : vector<1x256xi1> to vector<32x256xi1>
    %76 = arith.select %75, %68, %70 : vector<32x256xi1>, vector<32x256xf32>
    %77 = arith.maximumf %73, %76 : vector<32x256xf32>
    %78 = arith.maximumf %68, %77 : vector<32x256xf32>
    %cst = arith.constant dense<0.000000e+00> : vector<32x256xf32>
    %79 = tpu.matmul %45, %78, %cst {dimension_numbers = #tpu.dot_dimension_numbers<[1], [0], [0], [1], [0, 0, 1, 1], [], []>} : vector<32x32xf32>, vector<32x256xf32>, vector<32x256xf32> -> vector<32x256xf32>
    %80 = vector.broadcast %46 : vector<32x1xf32> to vector<32x256xf32>
    %81 = arith.addf %79, %80 : vector<32x256xf32>
    %cst_21 = arith.constant 0.000000e+00 : f32
    %82 = vector.broadcast %cst_21 : f32 to vector<32x256xf32>
    %83 = arith.maximumf %81, %82 : vector<32x256xf32>
    %c0_22 = arith.constant 0 : index
    %c0_23 = arith.constant 0 : index
    %c0_24 = arith.constant 0 : index
    %84 = vector.load %arg4[%c0_22, %c0_23, %c0_24] : memref<2x32x256xf32, #tpu.memory_space<vmem>>, vector<1x32x256xf32>
    %85 = vector.shape_cast %84 : vector<1x32x256xf32> to vector<32x256xf32>
    %86 = vector.shape_cast %83 : vector<32x256xf32> to vector<1x32x256xf32>
    tpu.vector_store %arg4[%c0_22, %c0_23, %c0_24], %86 {strides = array<i32>} : memref<2x32x256xf32, #tpu.memory_space<vmem>>, vector<1x32x256xf32>,
    %c1 = arith.constant 1 : index
    %c0_25 = arith.constant 0 : index
    %c0_26 = arith.constant 0 : index
    %87 = vector.load %arg1[%c1, %c0_25, %c0_26] : memref<2x32x256xf32, #tpu.memory_space<vmem>>, vector<1x32x256xf32>
    %88 = vector.shape_cast %87 : vector<1x32x256xf32> to vector<32x256xf32>
    %c255_i32_27 = arith.constant 255 : i32
    %89 = tpu.dynamic_rotate %88 by %c255_i32_27 dim 1 : vector<32x256xf32>, i32 -> vector<32x256xf32>
    %c1_i32_28 = arith.constant 1 : i32
    %90 = tpu.dynamic_rotate %88 by %c1_i32_28 dim 1 : vector<32x256xf32>, i32 -> vector<32x256xf32>
    %91 = vector.shape_cast %36 : vector<1x256xi1> to vector<1x256xi1>
    %92 = vector.broadcast %91 : vector<1x256xi1> to vector<32x256xi1>
    %93 = arith.select %92, %88, %89 : vector<32x256xi1>, vector<32x256xf32>
    %94 = vector.shape_cast %34 : vector<1x256xi1> to vector<1x256xi1>
    %95 = vector.broadcast %94 : vector<1x256xi1> to vector<32x256xi1>
    %96 = arith.select %95, %88, %90 : vector<32x256xi1>, vector<32x256xf32>
    %97 = arith.maximumf %93, %96 : vector<32x256xf32>
    %98 = arith.maximumf %88, %97 : vector<32x256xf32>
    %c248_i32_29 = arith.constant 248 : i32
    %99 = tpu.dynamic_rotate %98 by %c248_i32_29 dim 1 : vector<32x256xf32>, i32 -> vector<32x256xf32>
    %c8_i32_30 = arith.constant 8 : i32
    %100 = tpu.dynamic_rotate %98 by %c8_i32_30 dim 1 : vector<32x256xf32>, i32 -> vector<32x256xf32>
    %101 = vector.shape_cast %40 : vector<1x256xi1> to vector<1x256xi1>
    %102 = vector.broadcast %101 : vector<1x256xi1> to vector<32x256xi1>
    %103 = arith.select %102, %98, %99 : vector<32x256xi1>, vector<32x256xf32>
    %104 = vector.shape_cast %38 : vector<1x256xi1> to vector<1x256xi1>
    %105 = vector.broadcast %104 : vector<1x256xi1> to vector<32x256xi1>
    %106 = arith.select %105, %98, %100 : vector<32x256xi1>, vector<32x256xf32>
    %107 = arith.maximumf %103, %106 : vector<32x256xf32>
    %108 = arith.maximumf %98, %107 : vector<32x256xf32>
    %c192_i32_31 = arith.constant 192 : i32
    %109 = tpu.dynamic_rotate %108 by %c192_i32_31 dim 1 : vector<32x256xf32>, i32 -> vector<32x256xf32>
    %c64_i32_32 = arith.constant 64 : i32
    %110 = tpu.dynamic_rotate %108 by %c64_i32_32 dim 1 : vector<32x256xf32>, i32 -> vector<32x256xf32>
    %111 = vector.shape_cast %44 : vector<1x256xi1> to vector<1x256xi1>
    %112 = vector.broadcast %111 : vector<1x256xi1> to vector<32x256xi1>
    %113 = arith.select %112, %108, %109 : vector<32x256xi1>, vector<32x256xf32>
    %114 = vector.shape_cast %42 : vector<1x256xi1> to vector<1x256xi1>
    %115 = vector.broadcast %114 : vector<1x256xi1> to vector<32x256xi1>
    %116 = arith.select %115, %108, %110 : vector<32x256xi1>, vector<32x256xf32>
    %117 = arith.maximumf %113, %116 : vector<32x256xf32>
    %118 = arith.maximumf %108, %117 : vector<32x256xf32>
    %cst_33 = arith.constant dense<0.000000e+00> : vector<32x256xf32>
    %119 = tpu.matmul %45, %118, %cst_33 {dimension_numbers = #tpu.dot_dimension_numbers<[1], [0], [0], [1], [0, 0, 1, 1], [], []>} : vector<32x32xf32>, vector<32x256xf32>, vector<32x256xf32> -> vector<32x256xf32>
    %120 = vector.broadcast %46 : vector<32x1xf32> to vector<32x256xf32>
    %121 = arith.addf %119, %120 : vector<32x256xf32>
    %cst_34 = arith.constant 0.000000e+00 : f32
    %122 = vector.broadcast %cst_34 : f32 to vector<32x256xf32>
    %123 = arith.maximumf %121, %122 : vector<32x256xf32>
    %c1_35 = arith.constant 1 : index
    %c0_36 = arith.constant 0 : index
    %c0_37 = arith.constant 0 : index
    %124 = vector.load %arg4[%c1_35, %c0_36, %c0_37] : memref<2x32x256xf32, #tpu.memory_space<vmem>>, vector<1x32x256xf32>
    %125 = vector.shape_cast %124 : vector<1x32x256xf32> to vector<32x256xf32>
    %126 = vector.shape_cast %123 : vector<32x256xf32> to vector<1x32x256xf32>
    tpu.vector_store %arg4[%c1_35, %c0_36, %c0_37], %126 {strides = array<i32>} : memref<2x32x256xf32, #tpu.memory_space<vmem>>, vector<1x32x256xf32>,
    return
  }
  func.func @transform_0(%arg0: i32) -> (i32, i32, i32) {
    %c0_i32 = arith.constant 0 : i32
    %c0_i32_0 = arith.constant 0 : i32
    %c0_i32_1 = arith.constant 0 : i32
    return %arg0, %c0_i32, %c0_i32_0 : i32, i32, i32
  }
  func.func @transform_1(%arg0: i32) -> (i32, i32) {
    %c0_i32 = arith.constant 0 : i32
    %c0_i32_0 = arith.constant 0 : i32
    %c0_i32_1 = arith.constant 0 : i32
    return %c0_i32, %c0_i32_0 : i32, i32
  }
  func.func @transform_2(%arg0: i32) -> (i32, i32) {
    %c0_i32 = arith.constant 0 : i32
    %c0_i32_0 = arith.constant 0 : i32
    %c0_i32_1 = arith.constant 0 : i32
    return %c0_i32, %c0_i32_0 : i32, i32
  }
  func.func @transform_3(%arg0: i32) -> (i32, i32, i32) {
    %c0_i32 = arith.constant 0 : i32
    %c0_i32_0 = arith.constant 0 : i32
    %c0_i32_1 = arith.constant 0 : i32
    return %arg0, %c0_i32, %c0_i32_0 : i32, i32, i32
  }
}

</mosaic_0001>

<llo_original>
// kernel: tpu_custom_call.1
$region0: #{tpu_custom_call.1}
  #allocation0 [shape = 'u32[]', space=smem, size = 0x4, offset = 0x4, fixed_abs, tag = 'smem constant byte address 0x4 - core index']
  #allocation1 [shape = 'u32[72,128]{1,0:T(1,128)}', space=vmem, size = 0x9000, scoped, tag = 'internal scratch']
  %s0 = inlined_call_operand.hbm [shape: f32[2,32,256], index: 0, kind: input, shape index: {}]
  %s1 = inlined_call_operand.vmem [shape: f32[32,32], index: 1, kind: input, shape index: {}]
  %s2 = inlined_call_operand.vmem [shape: f32[32,1], index: 2, kind: input, shape index: {}]
  %s3 = inlined_call_operand.hbm [shape: f32[2,32,256], index: 3, kind: output, shape index: {}]
  %s4 = sld [smem:[#allocation0]]
  $region26: #{tpu_custom_call.1} parent=0
    _
  %s6 = ssub.s32 1, %s4
  %s7 = scalar_select 0, %s6, %s4
  $region1: #{tpu_custom_call.1} parent=0
    #allocation2 [shape = 'u8[65536]{0}', space=vmem, size = 0x10000, scoped, tag = 'input window, operand 0, single buffered']
    #allocation3 [shape = 's32[1]{0}', space=sflag, size = 0x4, scoped, tag = 'scoped memory for tpu_custom_call.1']
    #allocation4 [shape = 's32[1]{0}', space=sflag, size = 0x4, scoped, tag = 'scoped memory for tpu_custom_call.1']
    #allocation5 [shape = 'u8[65536]{0}', space=vmem, size = 0x10000, scoped, tag = 'output window, operand 0, single buffered']
    %8 = vsyncpa [#allocation3], 0
    %9 = vsyncpa [#allocation4], 0
    // Predicated region
    $region2: #{tpu_custom_call.1} parent=1 // pred_check
      _
    $region3: #{tpu_custom_call.1} parent=1 // pred_check_branch
      %11 = sbr.rel (0) target = $region5
    $region4: #{tpu_custom_call.1} parent=1 // pred_region
      %13 = vsyncadd [#allocation3], 0
      %s14 = sshll.u32 %s0, 4
      %s15 = int_to_ptr.hbm [resolvable:$true] %s14
      %s16 = sshll.u32 [#allocation2], 4
      %s17 = int_to_ptr.vmem [resolvable:$true] %s16
      %22 = dma.hbm_to_vmem [thread:$0]  %s15, 2048, %s17, [#allocation3], 256, 256, 16
    $region5: #{tpu_custom_call.1} parent=1 // pred_fallthru
      _
    // Predicated region
    $region6: #{tpu_custom_call.1} parent=1 // pred_check
      _
    $region7: #{tpu_custom_call.1} parent=1 // pred_check_branch
      %24 = sbr.rel (0) target = $region9
    $region8: #{tpu_custom_call.1} parent=1 // pred_region
      _
    $region9: #{tpu_custom_call.1} parent=1 // pred_fallthru
      _
    // Predicated region
    $region10: #{tpu_custom_call.1} parent=1 // pred_check
      _
    $region11: #{tpu_custom_call.1} parent=1 // pred_check_branch
      %26 = sbr.rel (0) target = $region13
    $region12: #{tpu_custom_call.1} parent=1 // pred_region
      _
    $region13: #{tpu_custom_call.1} parent=1 // pred_fallthru
      _
    // Predicated region
    $region14: #{tpu_custom_call.1} parent=1 // pred_check
      _
    $region15: #{tpu_custom_call.1} parent=1 // pred_check_branch
      %28 = sbr.rel (0) target = $region17
    $region16: #{tpu_custom_call.1} parent=1 // pred_region
      %30 = dma.done [#allocation3], 2048
    $region17: #{tpu_custom_call.1} parent=1 // pred_fallthru
      _
    %v31 = vlaneseq
    %v32 = vand.u32 %v31, 127
    %v33 = vadd.s32 %v32, 128
    %vm34 = vcmp.lt.s32.totalorder %v32, 0
    %v35 = vsub.s32 0, %v32
    %v36 = vsel %vm34, %v35, %v32
    %v37 = vshrl.u32 %v36, 3
    %v38 = vand.u32 %v36, 7
    %v39 = vsub.s32 0, %v38
    %v40 = vsel %vm34, %v39, %v38
    %vm41 = vcmp.lt.s32.totalorder %v33, 0
    %v42 = vsub.s32 0, %v33
    %v43 = vsel %vm41, %v42, %v33
    %v44 = vshrl.u32 %v43, 3
    %v45 = vand.u32 %v43, 7
    %v46 = vsub.s32 0, %v45
    %v47 = vsel %vm41, %v46, %v45
    %vm48 = vcmp.ne.s32.totalorder %v40, 0
    %vm49 = vcmp.ne.s32.totalorder %v47, 0
    %vm50 = vcmp.lt.s32.totalorder %v40, 0
    %vm51 = vcmp.lt.s32.totalorder %v47, 0
    %vm52 = vmand %vm50, %vm48
    %vm53 = vmand %vm51, %vm49
    %v54 = vadd.s32 %v40, 8
    %v55 = vadd.s32 %v47, 8
    %v56 = vsel %vm52, %v54, %v40
    %v57 = vsel %vm53, %v55, %v47
    %vm58 = vcmp.lt.s32.totalorder %v32, 0
    %v59 = vsub.s32 0, %v32
    %v60 = vsel %vm58, %v59, %v32
    %v61 = vshrl.u32 %v60, 6
    %v62 = vand.u32 %v60, 63
    %v63 = vsub.s32 0, %v62
    %v64 = vsel %vm58, %v63, %v62
    %vm65 = vcmp.lt.s32.totalorder %v33, 0
    %v66 = vsub.s32 0, %v33
    %v67 = vsel %vm65, %v66, %v33
    %v68 = vshrl.u32 %v67, 6
    %v69 = vand.u32 %v67, 63
    %v70 = vsub.s32 0, %v69
    %v71 = vsel %vm65, %v70, %v69
    %vm72 = vcmp.ne.s32.totalorder %v64, 0
    %vm73 = vcmp.ne.s32.totalorder %v71, 0
    %vm74 = vcmp.lt.s32.totalorder %v64, 0
    %vm75 = vcmp.lt.s32.totalorder %v71, 0
    %vm76 = vmand %vm74, %vm72
    %vm77 = vmand %vm75, %vm73
    %v78 = vadd.s32 %v64, 64
    %v79 = vadd.s32 %v71, 64
    %v80 = vsel %vm76, %v78, %v64
    %v81 = vsel %vm77, %v79, %v71
    %vm82 = vcmp.eq.s32.totalorder %v56, 0
    %vm83 = vcmp.eq.s32.totalorder %v57, 0
    %vm84 = vcmp.eq.s32.totalorder %v56, 7
    %vm85 = vcmp.eq.s32.totalorder %v57, 7
    %vm86 = vcmp.lt.s32.totalorder %v80, 8
    %vm87 = vcmp.lt.s32.totalorder %v81, 8
    %vm88 = vcmp.ge.s32.totalorder %v80, 56
    %vm89 = vcmp.ge.s32.totalorder %v81, 56
    %vm90 = vcmp.lt.s32.totalorder %v32, 64
    %vm91 = vcmp.lt.s32.totalorder %v33, 64
    %vm92 = vcmp.ge.s32.totalorder %v32, 192
    %vm93 = vcmp.ge.s32.totalorder %v33, 192
    %v94 = vld [vmem:[%s1] sm:$0xff]
    %v95 = vld [vmem:[%s1 + $0x8] sm:$0xff]
    %v96 = vld [vmem:[%s1 + $0x10] sm:$0xff]
    %v97 = vld [vmem:[%s1 + $0x18] sm:$0xff]
    %v98 = vld [vmem:[%s2] sm:$0xff]
    %v99 = vld [vmem:[%s2 + $0x8] sm:$0xff]
    %v100 = vld [vmem:[%s2 + $0x10] sm:$0xff]
    %v101 = vld [vmem:[%s2 + $0x18] sm:$0xff]
    %v102 = vld [vmem:[#allocation2] sm:$0xff]
    %v103 = vld [vmem:[#allocation2 + $0x8] sm:$0xff]
    %v104 = vld [vmem:[#allocation2 + $0x10] sm:$0xff]
    %v105 = vld [vmem:[#allocation2 + $0x18] sm:$0xff]
    %v106 = vld [vmem:[#allocation2 + $0x20] sm:$0xff]
    %v107 = vld [vmem:[#allocation2 + $0x28] sm:$0xff]
    %v108 = vld [vmem:[#allocation2 + $0x30] sm:$0xff]
    %v109 = vld [vmem:[#allocation2 + $0x38] sm:$0xff]
    %110 = vrot.lane.b32.xlu0 %v102, 127
    %v111 = vpop.permute.xlu0 %110
    %112 = vrot.lane.b32.xlu0 %v104, 127
    %v113 = vpop.permute.xlu0 %112
    %114 = vrot.lane.b32.xlu0 %v106, 127
    %v115 = vpop.permute.xlu0 %114
    %116 = vrot.lane.b32.xlu0 %v108, 127
    %v117 = vpop.permute.xlu0 %116
    %118 = vrot.lane.b32.xlu0 %v103, 127
    %v119 = vpop.permute.xlu0 %118
    %120 = vrot.lane.b32.xlu0 %v105, 127
    %v121 = vpop.permute.xlu0 %120
    %122 = vrot.lane.b32.xlu0 %v107, 127
    %v123 = vpop.permute.xlu0 %122
    %124 = vrot.lane.b32.xlu0 %v109, 127
    %v125 = vpop.permute.xlu0 %124
    %vm126 = vcmp.lt.s32.totalorder %v32, 127
    %v127 = vsel %vm126, %v111, %v119
    %v128 = vsel %vm126, %v113, %v121
    %v129 = vsel %vm126, %v115, %v123
    %v130 = vsel %vm126, %v117, %v125
    %v131 = vsel %vm126, %v119, %v111
    %v132 = vsel %vm126, %v121, %v113
    %v133 = vsel %vm126, %v123, %v115
    %v134 = vsel %vm126, %v125, %v117
    %135 = vrot.lane.b32.xlu0 %v102, 1
    %v136 = vpop.permute.xlu0 %135
    %137 = vrot.lane.b32.xlu0 %v104, 1
    %v138 = vpop.permute.xlu0 %137
    %139 = vrot.lane.b32.xlu0 %v106, 1
    %v140 = vpop.permute.xlu0 %139
    %141 = vrot.lane.b32.xlu0 %v108, 1
    %v142 = vpop.permute.xlu0 %141
    %143 = vrot.lane.b32.xlu0 %v103, 1
    %v144 = vpop.permute.xlu0 %143
    %145 = vrot.lane.b32.xlu0 %v105, 1
    %v146 = vpop.permute.xlu0 %145
    %147 = vrot.lane.b32.xlu0 %v107, 1
    %v148 = vpop.permute.xlu0 %147
    %149 = vrot.lane.b32.xlu0 %v109, 1
    %v150 = vpop.permute.xlu0 %149
    %vm151 = vcmp.lt.s32.totalorder %v32, 1
    %v152 = vsel %vm151, %v136, %v144
    %v153 = vsel %vm151, %v138, %v146
    %v154 = vsel %vm151, %v140, %v148
    %v155 = vsel %vm151, %v142, %v150
    %v156 = vsel %vm151, %v144, %v136
    %v157 = vsel %vm151, %v146, %v138
    %v158 = vsel %vm151, %v148, %v140
    %v159 = vsel %vm151, %v150, %v142
    %v160 = vsel %vm84, 1, 0
    %v161 = vsel %vm85, 1, 0
    %vm162 = vcmp.eq.s32.totalorder %v160, 1
    %vm163 = vcmp.eq.s32.totalorder %v161, 1
    %v164 = vsel %vm162, %v102, %v127
    %v165 = vsel %vm163, %v103, %v131
    %v166 = vsel %vm162, %v104, %v128
    %v167 = vsel %vm163, %v105, %v132
    %v168 = vsel %vm162, %v106, %v129
    %v169 = vsel %vm163, %v107, %v133
    %v170 = vsel %vm162, %v108, %v130
    %v171 = vsel %vm163, %v109, %v134
    %v172 = vsel %vm82, 1, 0
    %v173 = vsel %vm83, 1, 0
    %vm174 = vcmp.eq.s32.totalorder %v172, 1
    %vm175 = vcmp.eq.s32.totalorder %v173, 1
    %v176 = vsel %vm174, %v102, %v156
    %v177 = vsel %vm175, %v103, %v152
    %v178 = vsel %vm174, %v104, %v157
    %v179 = vsel %vm175, %v105, %v153
    %v180 = vsel %vm174, %v106, %v158
    %v181 = vsel %vm175, %v107, %v154
    %v182 = vsel %vm174, %v108, %v159
    %v183 = vsel %vm175, %v109, %v155
    %v184 = vmax.f32 %v164, %v176
    %v185 = vmax.f32 %v165, %v177
    %v186 = vmax.f32 %v166, %v178
    %v187 = vmax.f32 %v167, %v179
    %v188 = vmax.f32 %v168, %v180
    %v189 = vmax.f32 %v169, %v181
    %v190 = vmax.f32 %v170, %v182
    %v191 = vmax.f32 %v171, %v183
    %v192 = vmax.f32 %v102, %v184
    %v193 = vmax.f32 %v103, %v185
    %v194 = vmax.f32 %v104, %v186
    %v195 = vmax.f32 %v105, %v187
    %v196 = vmax.f32 %v106, %v188
    %v197 = vmax.f32 %v107, %v189
    %v198 = vmax.f32 %v108, %v190
    %v199 = vmax.f32 %v109, %v191
    %200 = vrot.lane.b32.xlu0 %v192, 120
    %v201 = vpop.permute.xlu0 %200
    %202 = vrot.lane.b32.xlu0 %v194, 120
    %v203 = vpop.permute.xlu0 %202
    %204 = vrot.lane.b32.xlu0 %v196, 120
    %v205 = vpop.permute.xlu0 %204
    %206 = vrot.lane.b32.xlu0 %v198, 120
    %v207 = vpop.permute.xlu0 %206
    %208 = vrot.lane.b32.xlu0 %v193, 120
    %v209 = vpop.permute.xlu0 %208
    %210 = vrot.lane.b32.xlu0 %v195, 120
    %v211 = vpop.permute.xlu0 %210
    %212 = vrot.lane.b32.xlu0 %v197, 120
    %v213 = vpop.permute.xlu0 %212
    %214 = vrot.lane.b32.xlu0 %v199, 120
    %v215 = vpop.permute.xlu0 %214
    %vm216 = vcmp.lt.s32.totalorder %v32, 120
    %v217 = vsel %vm216, %v201, %v209
    %v218 = vsel %vm216, %v203, %v211
    %v219 = vsel %vm216, %v205, %v213
    %v220 = vsel %vm216, %v207, %v215
    %v221 = vsel %vm216, %v209, %v201
    %v222 = vsel %vm216, %v211, %v203
    %v223 = vsel %vm216, %v213, %v205
    %v224 = vsel %vm216, %v215, %v207
    %225 = vrot.lane.b32.xlu0 %v192, 8
    %v226 = vpop.permute.xlu0 %225
    %227 = vrot.lane.b32.xlu0 %v194, 8
    %v228 = vpop.permute.xlu0 %227
    %229 = vrot.lane.b32.xlu0 %v196, 8
    %v230 = vpop.permute.xlu0 %229
    %231 = vrot.lane.b32.xlu0 %v198, 8
    %v232 = vpop.permute.xlu0 %231
    %233 = vrot.lane.b32.xlu0 %v193, 8
    %v234 = vpop.permute.xlu0 %233
    %235 = vrot.lane.b32.xlu0 %v195, 8
    %v236 = vpop.permute.xlu0 %235
    %237 = vrot.lane.b32.xlu0 %v197, 8
    %v238 = vpop.permute.xlu0 %237
    %239 = vrot.lane.b32.xlu0 %v199, 8
    %v240 = vpop.permute.xlu0 %239
    %vm241 = vcmp.lt.s32.totalorder %v32, 8
    %v242 = vsel %vm241, %v226, %v234
    %v243 = vsel %vm241, %v228, %v236
    %v244 = vsel %vm241, %v230, %v238
    %v245 = vsel %vm241, %v232, %v240
    %v246 = vsel %vm241, %v234, %v226
    %v247 = vsel %vm241, %v236, %v228
    %v248 = vsel %vm241, %v238, %v230
    %v249 = vsel %vm241, %v240, %v232
    %v250 = vsel %vm88, 1, 0
    %v251 = vsel %vm89, 1, 0
    %vm252 = vcmp.eq.s32.totalorder %v250, 1
    %vm253 = vcmp.eq.s32.totalorder %v251, 1
    %v254 = vsel %vm252, %v192, %v217
    %v255 = vsel %vm253, %v193, %v221
    %v256 = vsel %vm252, %v194, %v218
    %v257 = vsel %vm253, %v195, %v222
    %v258 = vsel %vm252, %v196, %v219
    %v259 = vsel %vm253, %v197, %v223
    %v260 = vsel %vm252, %v198, %v220
    %v261 = vsel %vm253, %v199, %v224
    %v262 = vsel %vm86, 1, 0
    %v263 = vsel %vm87, 1, 0
    %vm264 = vcmp.eq.s32.totalorder %v262, 1
    %vm265 = vcmp.eq.s32.totalorder %v263, 1
    %v266 = vsel %vm264, %v192, %v246
    %v267 = vsel %vm265, %v193, %v242
    %v268 = vsel %vm264, %v194, %v247
    %v269 = vsel %vm265, %v195, %v243
    %v270 = vsel %vm264, %v196, %v248
    %v271 = vsel %vm265, %v197, %v244
    %v272 = vsel %vm264, %v198, %v249
    %v273 = vsel %vm265, %v199, %v245
    %v274 = vmax.f32 %v254, %v266
    %v275 = vmax.f32 %v255, %v267
    %v276 = vmax.f32 %v256, %v268
    %v277 = vmax.f32 %v257, %v269
    %v278 = vmax.f32 %v258, %v270
    %v279 = vmax.f32 %v259, %v271
    %v280 = vmax.f32 %v260, %v272
    %v281 = vmax.f32 %v261, %v273
    %v282 = vmax.f32 %v192, %v274
    %v283 = vmax.f32 %v193, %v275
    %v284 = vmax.f32 %v194, %v276
    %v285 = vmax.f32 %v195, %v277
    %v286 = vmax.f32 %v196, %v278
    %v287 = vmax.f32 %v197, %v279
    %v288 = vmax.f32 %v198, %v280
    %v289 = vmax.f32 %v199, %v281
    %290 = vrot.lane.b32.xlu0 %v282, 64
    %v291 = vpop.permute.xlu0 %290
    %292 = vrot.lane.b32.xlu0 %v284, 64
    %v293 = vpop.permute.xlu0 %292
    %294 = vrot.lane.b32.xlu0 %v286, 64
    %v295 = vpop.permute.xlu0 %294
    %296 = vrot.lane.b32.xlu0 %v288, 64
    %v297 = vpop.permute.xlu0 %296
    %298 = vrot.lane.b32.xlu0 %v283, 64
    %v299 = vpop.permute.xlu0 %298
    %300 = vrot.lane.b32.xlu0 %v285, 64
    %v301 = vpop.permute.xlu0 %300
    %302 = vrot.lane.b32.xlu0 %v287, 64
    %v303 = vpop.permute.xlu0 %302
    %304 = vrot.lane.b32.xlu0 %v289, 64
    %v305 = vpop.permute.xlu0 %304
    %v306 = vsel %vm90, %v291, %v299
    %v307 = vsel %vm90, %v293, %v301
    %v308 = vsel %vm90, %v295, %v303
    %v309 = vsel %vm90, %v297, %v305
    %v310 = vsel %vm90, %v299, %v291
    %v311 = vsel %vm90, %v301, %v293
    %v312 = vsel %vm90, %v303, %v295
    %v313 = vsel %vm90, %v305, %v297
    %v314 = vsel %vm92, 1, 0
    %v315 = vsel %vm93, 1, 0
    %vm316 = vcmp.eq.s32.totalorder %v314, 1
    %vm317 = vcmp.eq.s32.totalorder %v315, 1
    %v318 = vsel %vm316, %v282, %v306
    %v319 = vsel %vm317, %v283, %v310
    %v320 = vsel %vm316, %v284, %v307
    %v321 = vsel %vm317, %v285, %v311
    %v322 = vsel %vm316, %v286, %v308
    %v323 = vsel %vm317, %v287, %v312
    %v324 = vsel %vm316, %v288, %v309
    %v325 = vsel %vm317, %v289, %v313
    %v326 = vsel %vm90, 1, 0
    %v327 = vsel %vm91, 1, 0
    %vm328 = vcmp.eq.s32.totalorder %v326, 1
    %vm329 = vcmp.eq.s32.totalorder %v327, 1
    %v330 = vsel %vm328, %v282, %v310
    %v331 = vsel %vm329, %v283, %v306
    %v332 = vsel %vm328, %v284, %v311
    %v333 = vsel %vm329, %v285, %v307
    %v334 = vsel %vm328, %v286, %v312
    %v335 = vsel %vm329, %v287, %v308
    %v336 = vsel %vm328, %v288, %v313
    %v337 = vsel %vm329, %v289, %v309
    %v338 = vmax.f32 %v318, %v330
    %v339 = vmax.f32 %v319, %v331
    %v340 = vmax.f32 %v320, %v332
    %v341 = vmax.f32 %v321, %v333
    %v342 = vmax.f32 %v322, %v334
    %v343 = vmax.f32 %v323, %v335
    %v344 = vmax.f32 %v324, %v336
    %v345 = vmax.f32 %v325, %v337
    %v346 = vmax.f32 %v282, %v338
    %v347 = vmax.f32 %v283, %v339
    %v348 = vmax.f32 %v284, %v340
    %v349 = vmax.f32 %v285, %v341
    %v350 = vmax.f32 %v286, %v342
    %v351 = vmax.f32 %v287, %v343
    %v352 = vmax.f32 %v288, %v344
    %v353 = vmax.f32 %v289, %v345
    %355 = vset.pattern.permute.xlu0 0
    %356 = vperm.xlu0 %355, %v98
    %v357 = vpop.permute.xlu0 %356
    %360 = vset.pattern.permute.xlu0 0
    %361 = vperm.xlu0 %360, %v99
    %v362 = vpop.permute.xlu0 %361
    %365 = vset.pattern.permute.xlu0 0
    %366 = vperm.xlu0 %365, %v100
    %v367 = vpop.permute.xlu0 %366
    %370 = vset.pattern.permute.xlu0 0
    %371 = vperm.xlu0 %370, %v101
    %v372 = vpop.permute.xlu0 %371
    %vm374 = vcmask 261120
    %v376 = vsel %vm374, %v94, 0
    %v379 = vsel %vm374, %v95, 0
    %v382 = vsel %vm374, %v96, 0
    %v385 = vsel %vm374, %v97, 0
    %387 = vmatpush.msra.mxu0 0.0
    %388 = vmatpush.msra.mxu0 0.0
    %389 = vmatpush.msra.mxu0 0.0
    %390 = vmatpush.msra.mxu0 0.0
    %391 = vmatpush.msra.mxu0 0.0
    %392 = vmatpush.msra.mxu0 0.0
    %393 = vmatpush.msra.mxu0 0.0
    %394 = vmatpush.msra.mxu0 0.0
    %395 = vmatpush.msra.mxu0 0.0
    %396 = vmatpush.msra.mxu0 0.0
    %397 = vmatpush.msra.mxu0 0.0
    %398 = vmatpush.msra.mxu0 0.0
    %399 = vmatpush.msra.mxu0 %v352
    %400 = vmatpush.msra.mxu0 %v350
    %401 = vmatpush.msra.mxu0 %v348
    %402 = vmatpush.msra.mxu0 %v346
    %403 = vmatmul.f32.gmra.mxu0 %v376
    %v404 = vpop.f32.mrf.mxu0
    %v405 = vadd.f32 %v357, %v404
    %406 = vmatmul.f32.gmra.mxu0 %v379
    %v407 = vpop.f32.mrf.mxu0
    %v408 = vadd.f32 %v362, %v407
    %409 = vmatmul.f32.gmra.mxu0 %v382
    %v410 = vpop.f32.mrf.mxu0
    %v411 = vadd.f32 %v367, %v410
    %412 = vmatmul.f32.gmra.mxu0 %v385
    %v413 = vpop.f32.mrf.mxu0
    %v414 = vadd.f32 %v372, %v413
    %415 = vdwg.mxu0
    %416 = vmatpush.msra.mxu0 0.0
    %417 = vmatpush.msra.mxu0 0.0
    %418 = vmatpush.msra.mxu0 0.0
    %419 = vmatpush.msra.mxu0 0.0
    %420 = vmatpush.msra.mxu0 0.0
    %421 = vmatpush.msra.mxu0 0.0
    %422 = vmatpush.msra.mxu0 0.0
    %423 = vmatpush.msra.mxu0 0.0
    %424 = vmatpush.msra.mxu0 0.0
    %425 = vmatpush.msra.mxu0 0.0
    %426 = vmatpush.msra.mxu0 0.0
    %427 = vmatpush.msra.mxu0 0.0
    %428 = vmatpush.msra.mxu0 %v353
    %429 = vmatpush.msra.mxu0 %v351
    %430 = vmatpush.msra.mxu0 %v349
    %431 = vmatpush.msra.mxu0 %v347
    %432 = vmatmul.f32.gmra.mxu0 %v376
    %v433 = vpop.f32.mrf.mxu0
    %v434 = vadd.f32 %v357, %v433
    %435 = vmatmul.f32.gmra.mxu0 %v379
    %v436 = vpop.f32.mrf.mxu0
    %v437 = vadd.f32 %v362, %v436
    %438 = vmatmul.f32.gmra.mxu0 %v382
    %v439 = vpop.f32.mrf.mxu0
    %v440 = vadd.f32 %v367, %v439
    %441 = vmatmul.f32.gmra.mxu0 %v385
    %v442 = vpop.f32.mrf.mxu0
    %v443 = vadd.f32 %v372, %v442
    %444 = vdwg.mxu0
    %v445 = vmax.f32 %v405, 0.0
    %v446 = vmax.f32 %v434, 0.0
    %v447 = vmax.f32 %v408, 0.0
    %v448 = vmax.f32 %v437, 0.0
    %v449 = vmax.f32 %v411, 0.0
    %v450 = vmax.f32 %v440, 0.0
    %v451 = vmax.f32 %v414, 0.0
    %v452 = vmax.f32 %v443, 0.0
    %453 = vst [vmem:[#allocation5] sm:$0xff] %v445
    %454 = vst [vmem:[#allocation5 + $0x8] sm:$0xff] %v446
    %455 = vst [vmem:[#allocation5 + $0x10] sm:$0xff] %v447
    %456 = vst [vmem:[#allocation5 + $0x18] sm:$0xff] %v448
    %457 = vst [vmem:[#allocation5 + $0x20] sm:$0xff] %v449
    %458 = vst [vmem:[#allocation5 + $0x28] sm:$0xff] %v450
    %459 = vst [vmem:[#allocation5 + $0x30] sm:$0xff] %v451
    %460 = vst [vmem:[#allocation5 + $0x38] sm:$0xff] %v452
    %s461 = scalar_lea.vmem [#allocation2], 64
    %v462 = vld [vmem:[%s461] sm:$0xff]
    %v463 = vld [vmem:[%s461 + $0x8] sm:$0xff]
    %v464 = vld [vmem:[%s461 + $0x10] sm:$0xff]
    %v465 = vld [vmem:[%s461 + $0x18] sm:$0xff]
    %v466 = vld [vmem:[%s461 + $0x20] sm:$0xff]
    %v467 = vld [vmem:[%s461 + $0x28] sm:$0xff]
    %v468 = vld [vmem:[%s461 + $0x30] sm:$0xff]
    %v469 = vld [vmem:[%s461 + $0x38] sm:$0xff]
    %470 = vrot.lane.b32.xlu0 %v462, 127
    %v471 = vpop.permute.xlu0 %470
    %472 = vrot.lane.b32.xlu0 %v464, 127
    %v473 = vpop.permute.xlu0 %472
    %474 = vrot.lane.b32.xlu0 %v466, 127
    %v475 = vpop.permute.xlu0 %474
    %476 = vrot.lane.b32.xlu0 %v468, 127
    %v477 = vpop.permute.xlu0 %476
    %478 = vrot.lane.b32.xlu0 %v463, 127
    %v479 = vpop.permute.xlu0 %478
    %480 = vrot.lane.b32.xlu0 %v465, 127
    %v481 = vpop.permute.xlu0 %480
    %482 = vrot.lane.b32.xlu0 %v467, 127
    %v483 = vpop.permute.xlu0 %482
    %484 = vrot.lane.b32.xlu0 %v469, 127
    %v485 = vpop.permute.xlu0 %484
    %v486 = vsel %vm126, %v471, %v479
    %v487 = vsel %vm126, %v473, %v481
    %v488 = vsel %vm126, %v475, %v483
    %v489 = vsel %vm126, %v477, %v485
    %v490 = vsel %vm126, %v479, %v471
    %v491 = vsel %vm126, %v481, %v473
    %v492 = vsel %vm126, %v483, %v475
    %v493 = vsel %vm126, %v485, %v477
    %494 = vrot.lane.b32.xlu0 %v462, 1
    %v495 = vpop.permute.xlu0 %494
    %496 = vrot.lane.b32.xlu0 %v464, 1
    %v497 = vpop.permute.xlu0 %496
    %498 = vrot.lane.b32.xlu0 %v466, 1
    %v499 = vpop.permute.xlu0 %498
    %500 = vrot.lane.b32.xlu0 %v468, 1
    %v501 = vpop.permute.xlu0 %500
    %502 = vrot.lane.b32.xlu0 %v463, 1
    %v503 = vpop.permute.xlu0 %502
    %504 = vrot.lane.b32.xlu0 %v465, 1
    %v505 = vpop.permute.xlu0 %504
    %506 = vrot.lane.b32.xlu0 %v467, 1
    %v507 = vpop.permute.xlu0 %506
    %508 = vrot.lane.b32.xlu0 %v469, 1
    %v509 = vpop.permute.xlu0 %508
    %v510 = vsel %vm151, %v495, %v503
    %v511 = vsel %vm151, %v497, %v505
    %v512 = vsel %vm151, %v499, %v507
    %v513 = vsel %vm151, %v501, %v509
    %v514 = vsel %vm151, %v503, %v495
    %v515 = vsel %vm151, %v505, %v497
    %v516 = vsel %vm151, %v507, %v499
    %v517 = vsel %vm151, %v509, %v501
    %v518 = vsel %vm162, %v462, %v486
    %v519 = vsel %vm163, %v463, %v490
    %v520 = vsel %vm162, %v464, %v487
    %v521 = vsel %vm163, %v465, %v491
    %v522 = vsel %vm162, %v466, %v488
    %v523 = vsel %vm163, %v467, %v492
    %v524 = vsel %vm162, %v468, %v489
    %v525 = vsel %vm163, %v469, %v493
    %v526 = vsel %vm174, %v462, %v514
    %v527 = vsel %vm175, %v463, %v510
    %v528 = vsel %vm174, %v464, %v515
    %v529 = vsel %vm175, %v465, %v511
    %v530 = vsel %vm174, %v466, %v516
    %v531 = vsel %vm175, %v467, %v512
    %v532 = vsel %vm174, %v468, %v517
    %v533 = vsel %vm175, %v469, %v513
    %v534 = vmax.f32 %v518, %v526
    %v535 = vmax.f32 %v519, %v527
    %v536 = vmax.f32 %v520, %v528
    %v537 = vmax.f32 %v521, %v529
    %v538 = vmax.f32 %v522, %v530
    %v539 = vmax.f32 %v523, %v531
    %v540 = vmax.f32 %v524, %v532
    %v541 = vmax.f32 %v525, %v533
    %v542 = vmax.f32 %v462, %v534
    %v543 = vmax.f32 %v463, %v535
    %v544 = vmax.f32 %v464, %v536
    %v545 = vmax.f32 %v465, %v537
    %v546 = vmax.f32 %v466, %v538
    %v547 = vmax.f32 %v467, %v539
    %v548 = vmax.f32 %v468, %v540
    %v549 = vmax.f32 %v469, %v541
    %550 = vrot.lane.b32.xlu0 %v542, 120
    %v551 = vpop.permute.xlu0 %550
    %552 = vrot.lane.b32.xlu0 %v544, 120
    %v553 = vpop.permute.xlu0 %552
    %554 = vrot.lane.b32.xlu0 %v546, 120
    %v555 = vpop.permute.xlu0 %554
    %556 = vrot.lane.b32.xlu0 %v548, 120
    %v557 = vpop.permute.xlu0 %556
    %558 = vrot.lane.b32.xlu0 %v543, 120
    %v559 = vpop.permute.xlu0 %558
    %560 = vrot.lane.b32.xlu0 %v545, 120
    %v561 = vpop.permute.xlu0 %560
    %562 = vrot.lane.b32.xlu0 %v547, 120
    %v563 = vpop.permute.xlu0 %562
    %564 = vrot.lane.b32.xlu0 %v549, 120
    %v565 = vpop.permute.xlu0 %564
    %v566 = vsel %vm216, %v551, %v559
    %v567 = vsel %vm216, %v553, %v561
    %v568 = vsel %vm216, %v555, %v563
    %v569 = vsel %vm216, %v557, %v565
    %v570 = vsel %vm216, %v559, %v551
    %v571 = vsel %vm216, %v561, %v553
    %v572 = vsel %vm216, %v563, %v555
    %v573 = vsel %vm216, %v565, %v557
    %574 = vrot.lane.b32.xlu0 %v542, 8
    %v575 = vpop.permute.xlu0 %574
    %576 = vrot.lane.b32.xlu0 %v544, 8
    %v577 = vpop.permute.xlu0 %576
    %578 = vrot.lane.b32.xlu0 %v546, 8
    %v579 = vpop.permute.xlu0 %578
    %580 = vrot.lane.b32.xlu0 %v548, 8
    %v581 = vpop.permute.xlu0 %580
    %582 = vrot.lane.b32.xlu0 %v543, 8
    %v583 = vpop.permute.xlu0 %582
    %584 = vrot.lane.b32.xlu0 %v545, 8
    %v585 = vpop.permute.xlu0 %584
    %586 = vrot.lane.b32.xlu0 %v547, 8
    %v587 = vpop.permute.xlu0 %586
    %588 = vrot.lane.b32.xlu0 %v549, 8
    %v589 = vpop.permute.xlu0 %588
    %v590 = vsel %vm241, %v575, %v583
    %v591 = vsel %vm241, %v577, %v585
    %v592 = vsel %vm241, %v579, %v587
    %v593 = vsel %vm241, %v581, %v589
    %v594 = vsel %vm241, %v583, %v575
    %v595 = vsel %vm241, %v585, %v577
    %v596 = vsel %vm241, %v587, %v579
    %v597 = vsel %vm241, %v589, %v581
    %v598 = vsel %vm252, %v542, %v566
    %v599 = vsel %vm253, %v543, %v570
    %v600 = vsel %vm252, %v544, %v567
    %v601 = vsel %vm253, %v545, %v571
    %v602 = vsel %vm252, %v546, %v568
    %v603 = vsel %vm253, %v547, %v572
    %v604 = vsel %vm252, %v548, %v569
    %v605 = vsel %vm253, %v549, %v573
    %v606 = vsel %vm264, %v542, %v594
    %v607 = vsel %vm265, %v543, %v590
    %v608 = vsel %vm264, %v544, %v595
    %v609 = vsel %vm265, %v545, %v591
    %v610 = vsel %vm264, %v546, %v596
    %v611 = vsel %vm265, %v547, %v592
    %v612 = vsel %vm264, %v548, %v597
    %v613 = vsel %vm265, %v549, %v593
    %v614 = vmax.f32 %v598, %v606
    %v615 = vmax.f32 %v599, %v607
    %v616 = vmax.f32 %v600, %v608
    %v617 = vmax.f32 %v601, %v609
    %v618 = vmax.f32 %v602, %v610
    %v619 = vmax.f32 %v603, %v611
    %v620 = vmax.f32 %v604, %v612
    %v621 = vmax.f32 %v605, %v613
    %v622 = vmax.f32 %v542, %v614
    %v623 = vmax.f32 %v543, %v615
    %v624 = vmax.f32 %v544, %v616
    %v625 = vmax.f32 %v545, %v617
    %v626 = vmax.f32 %v546, %v618
    %v627 = vmax.f32 %v547, %v619
    %v628 = vmax.f32 %v548, %v620
    %v629 = vmax.f32 %v549, %v621
    %630 = vrot.lane.b32.xlu0 %v622, 64
    %v631 = vpop.permute.xlu0 %630
    %632 = vrot.lane.b32.xlu0 %v624, 64
    %v633 = vpop.permute.xlu0 %632
    %634 = vrot.lane.b32.xlu0 %v626, 64
    %v635 = vpop.permute.xlu0 %634
    %636 = vrot.lane.b32.xlu0 %v628, 64
    %v637 = vpop.permute.xlu0 %636
    %638 = vrot.lane.b32.xlu0 %v623, 64
    %v639 = vpop.permute.xlu0 %638
    %640 = vrot.lane.b32.xlu0 %v625, 64
    %v641 = vpop.permute.xlu0 %640
    %642 = vrot.lane.b32.xlu0 %v627, 64
    %v643 = vpop.permute.xlu0 %642
    %644 = vrot.lane.b32.xlu0 %v629, 64
    %v645 = vpop.permute.xlu0 %644
    %v646 = vsel %vm90, %v631, %v639
    %v647 = vsel %vm90, %v633, %v641
    %v648 = vsel %vm90, %v635, %v643
    %v649 = vsel %vm90, %v637, %v645
    %v650 = vsel %vm90, %v639, %v631
    %v651 = vsel %vm90, %v641, %v633
    %v652 = vsel %vm90, %v643, %v635
    %v653 = vsel %vm90, %v645, %v637
    %v654 = vsel %vm316, %v622, %v646
    %v655 = vsel %vm317, %v623, %v650
    %v656 = vsel %vm316, %v624, %v647
    %v657 = vsel %vm317, %v625, %v651
    %v658 = vsel %vm316, %v626, %v648
    %v659 = vsel %vm317, %v627, %v652
    %v660 = vsel %vm316, %v628, %v649
    %v661 = vsel %vm317, %v629, %v653
    %v662 = vsel %vm328, %v622, %v650
    %v663 = vsel %vm329, %v623, %v646
    %v664 = vsel %vm328, %v624, %v651
    %v665 = vsel %vm329, %v625, %v647
    %v666 = vsel %vm328, %v626, %v652
    %v667 = vsel %vm329, %v627, %v648
    %v668 = vsel %vm328, %v628, %v653
    %v669 = vsel %vm329, %v629, %v649
    %v670 = vmax.f32 %v654, %v662
    %v671 = vmax.f32 %v655, %v663
    %v672 = vmax.f32 %v656, %v664
    %v673 = vmax.f32 %v657, %v665
    %v674 = vmax.f32 %v658, %v666
    %v675 = vmax.f32 %v659, %v667
    %v676 = vmax.f32 %v660, %v668
    %v677 = vmax.f32 %v661, %v669
    %v678 = vmax.f32 %v622, %v670
    %v679 = vmax.f32 %v623, %v671
    %v680 = vmax.f32 %v624, %v672
    %v681 = vmax.f32 %v625, %v673
    %v682 = vmax.f32 %v626, %v674
    %v683 = vmax.f32 %v627, %v675
    %v684 = vmax.f32 %v628, %v676
    %v685 = vmax.f32 %v629, %v677
    %686 = vmatpush.msra.mxu0 0.0
    %687 = vmatpush.msra.mxu0 0.0
    %688 = vmatpush.msra.mxu0 0.0
    %689 = vmatpush.msra.mxu0 0.0
    %690 = vmatpush.msra.mxu0 0.0
    %691 = vmatpush.msra.mxu0 0.0
    %692 = vmatpush.msra.mxu0 0.0
    %693 = vmatpush.msra.mxu0 0.0
    %694 = vmatpush.msra.mxu0 0.0
    %695 = vmatpush.msra.mxu0 0.0
    %696 = vmatpush.msra.mxu0 0.0
    %697 = vmatpush.msra.mxu0 0.0
    %698 = vmatpush.msra.mxu0 %v684
    %699 = vmatpush.msra.mxu0 %v682
    %700 = vmatpush.msra.mxu0 %v680
    %701 = vmatpush.msra.mxu0 %v678
    %702 = vmatmul.f32.gmra.mxu0 %v376
    %v703 = vpop.f32.mrf.mxu0
    %v704 = vadd.f32 %v357, %v703
    %705 = vmatmul.f32.gmra.mxu0 %v379
    %v706 = vpop.f32.mrf.mxu0
    %v707 = vadd.f32 %v362, %v706
    %708 = vmatmul.f32.gmra.mxu0 %v382
    %v709 = vpop.f32.mrf.mxu0
    %v710 = vadd.f32 %v367, %v709
    %711 = vmatmul.f32.gmra.mxu0 %v385
    %v712 = vpop.f32.mrf.mxu0
    %v713 = vadd.f32 %v372, %v712
    %714 = vdwg.mxu0
    %715 = vmatpush.msra.mxu0 0.0
    %716 = vmatpush.msra.mxu0 0.0
    %717 = vmatpush.msra.mxu0 0.0
    %718 = vmatpush.msra.mxu0 0.0
    %719 = vmatpush.msra.mxu0 0.0
    %720 = vmatpush.msra.mxu0 0.0
    %721 = vmatpush.msra.mxu0 0.0
    %722 = vmatpush.msra.mxu0 0.0
    %723 = vmatpush.msra.mxu0 0.0
    %724 = vmatpush.msra.mxu0 0.0
    %725 = vmatpush.msra.mxu0 0.0
    %726 = vmatpush.msra.mxu0 0.0
    %727 = vmatpush.msra.mxu0 %v685
    %728 = vmatpush.msra.mxu0 %v683
    %729 = vmatpush.msra.mxu0 %v681
    %730 = vmatpush.msra.mxu0 %v679
    %731 = vmatmul.f32.gmra.mxu0 %v376
    %v732 = vpop.f32.mrf.mxu0
    %v733 = vadd.f32 %v357, %v732
    %734 = vmatmul.f32.gmra.mxu0 %v379
    %v735 = vpop.f32.mrf.mxu0
    %v736 = vadd.f32 %v362, %v735
    %737 = vmatmul.f32.gmra.mxu0 %v382
    %v738 = vpop.f32.mrf.mxu0
    %v739 = vadd.f32 %v367, %v738
    %740 = vmatmul.f32.gmra.mxu0 %v385
    %v741 = vpop.f32.mrf.mxu0
    %v742 = vadd.f32 %v372, %v741
    %743 = vdwg.mxu0
    %v744 = vmax.f32 %v704, 0.0
    %v745 = vmax.f32 %v733, 0.0
    %v746 = vmax.f32 %v707, 0.0
    %v747 = vmax.f32 %v736, 0.0
    %v748 = vmax.f32 %v710, 0.0
    %v749 = vmax.f32 %v739, 0.0
    %v750 = vmax.f32 %v713, 0.0
    %v751 = vmax.f32 %v742, 0.0
    %s752 = scalar_lea.vmem [#allocation5], 64
    %753 = vst [vmem:[%s752] sm:$0xff] %v744
    %754 = vst [vmem:[%s752 + $0x8] sm:$0xff] %v745
    %755 = vst [vmem:[%s752 + $0x10] sm:$0xff] %v746
    %756 = vst [vmem:[%s752 + $0x18] sm:$0xff] %v747
    %757 = vst [vmem:[%s752 + $0x20] sm:$0xff] %v748
    %758 = vst [vmem:[%s752 + $0x28] sm:$0xff] %v749
    %759 = vst [vmem:[%s752 + $0x30] sm:$0xff] %v750
    %760 = vst [vmem:[%s752 + $0x38] sm:$0xff] %v751
    // Predicated region
    $region18: #{tpu_custom_call.1} parent=1 // pred_check
      _
    $region19: #{tpu_custom_call.1} parent=1 // pred_check_branch
      %762 = sbr.rel (0) target = $region21
    $region20: #{tpu_custom_call.1} parent=1 // pred_region
      %764 = vsyncadd [#allocation4], 0
      %s765 = sshll.u32 [#allocation5], 4
      %s766 = int_to_ptr.vmem [resolvable:$true] %s765
      %s767 = sshll.u32 %s3, 4
      %s768 = int_to_ptr.hbm [resolvable:$true] %s767
      %773 = dma.vmem_to_hbm [thread:$0]  %s766, 2048, %s768, [#allocation4], 256, 256, 16
    $region21: #{tpu_custom_call.1} parent=1 // pred_fallthru
      _
    // Predicated region
    $region22: #{tpu_custom_call.1} parent=1 // pred_check
      _
    $region23: #{tpu_custom_call.1} parent=1 // pred_check_branch
      %775 = sbr.rel (0) target = $region25
    $region24: #{tpu_custom_call.1} parent=1 // pred_region
      %777 = dma.done [#allocation4], 2048
    $region25: #{tpu_custom_call.1} parent=1 // pred_fallthru
      _
    %778 = vsyncpa [#allocation3], 1
    %779 = vsyncpa [#allocation4], 1

</llo_original>
